<compile_context>
chip_gen: v7x
topology: tpu7x:2x2x1
jax: 0.10.0
libtpu: 0.0.40
codegen_flags: <defaults>
</compile_context>

<pallas_src>
import jax
import jax.numpy as jnp
from jax import lax
from jax.experimental import pallas as pl
from jax.experimental.pallas import tpu as pltpu


def _round_up(a: int, b: int) -> int:
    return (a + b - 1) // b * b


def conv_add_kernel(p_ref, w_ref, o_ref):
    """out = P @ (W1 + W2): a single MXU matmul with f32 accumulation."""
    o_ref[...] = jnp.dot(
        p_ref[...], w_ref[...], preferred_element_type=jnp.float32
    ).astype(o_ref.dtype)


def _pick_tm(kp: int, cp: int, itemsize: int, tm_max: int, budget_bytes: int) -> int:
    """Largest M tile whose pipelined working set fits the VMEM budget."""
    for t in (1024, 512, 256, 128, 64, 32, 16, 8):
        if t > tm_max:
            continue
        need = (
            2 * t * kp * itemsize      # P tile, double-buffered
            + kp * cp * itemsize       # fused weight, single-buffered
            + 2 * t * cp * 4           # f32 output tile, double-buffered
        )
        if need <= budget_bytes:
            return t
    return 8


def ipex_conv_add(x_nchw, w1_oihw, w2_oihw, *, stride=1, padding=0, tm=1024):
    """conv2d(x, w1) + conv2d(x, w2) (both bias-free), NCHW in / NCHW out."""
    N, Cin, H, W = x_nchw.shape
    Cout, Cin2, KH, KW = w1_oihw.shape
    assert Cin == Cin2 and w2_oihw.shape == w1_oihw.shape

    # NCHW -> NHWC (channels-last = lane-dense on TPU).
    x = jnp.transpose(x_nchw, (0, 2, 3, 1))
    if padding:
        x = jnp.pad(x, ((0, 0), (padding, padding), (padding, padding), (0, 0)))
    Hp, Wp = x.shape[1], x.shape[2]
    Ho = (Hp - KH) // stride + 1
    Wo = (Wp - KW) // stride + 1

    # im2col: patches (N*Ho*Wo, KH*KW*Cin) in (kh, kw, c) tap order.
    cols = []
    for kh in range(KH):
        for kw in range(KW):
            cols.append(
                x[:, kh : kh + Ho * stride : stride, kw : kw + Wo * stride : stride, :]
            )
    K = KH * KW * Cin
    M = N * Ho * Wo
    patches = jnp.concatenate(cols, axis=-1).reshape(M, K)

    # Fold the add into the weights: conv1(x)+conv2(x) == conv(x, w1+w2).
    # Weights OIHW -> (KH*KW*Cin, Cout) in the same (kh, kw, c) tap order.
    w_fused = jnp.transpose(w1_oihw + w2_oihw, (2, 3, 1, 0)).reshape(K, Cout)

    itemsize = jnp.dtype(patches.dtype).itemsize
    out_dtype = x_nchw.dtype

    # Lane-dense padding: K and Cout up to multiples of 128 (zero rows/cols
    # contribute nothing to the contraction; padded output cols are sliced
    # off below).
    Kp = _round_up(K, 128)
    Cp = _round_up(Cout, 128)

    # M tile: largest that fits a conservative VMEM budget (v7x has only
    # 64 MiB per TensorCore), then keep the grid >= 2 steps when M permits
    # so both v7x cores get work.
    vmem_budget = 40 * 1024 * 1024
    tm_eff = _pick_tm(Kp, Cp, itemsize, tm, vmem_budget)
    tm_eff = min(tm_eff, _round_up(M, 8))
    if M > 8 and _round_up(M, tm_eff) // tm_eff < 2:
        tm_eff = max(8, _round_up((M + 1) // 2, 8))
    Mp = _round_up(M, tm_eff)

    patches = jnp.pad(patches, ((0, Mp - M), (0, Kp - K)))
    w_fused = jnp.pad(w_fused, ((0, Kp - K), (0, Cp - Cout)))

    grid = (Mp // tm_eff,)

    vmem_needed = (
        2 * tm_eff * Kp * itemsize
        + Kp * Cp * itemsize
        + 2 * tm_eff * Cp * 4
    )
    vmem_limit = int(min(max(2 * vmem_needed, 16 * 1024 * 1024), 48 * 1024 * 1024))

    out_flat = pl.pallas_call(
        conv_add_kernel,
        out_shape=jax.ShapeDtypeStruct((Mp, Cp), out_dtype),
        grid_spec=pltpu.PrefetchScalarGridSpec(
            num_scalar_prefetch=0,
            grid=grid,
            in_specs=[
                # Patch tile: streams across the grid (double-buffered).
                pl.BlockSpec((tm_eff, Kp), lambda i: (i, 0)),
                # Fused weight: grid-invariant -> single buffer is enough.
                pl.BlockSpec(
                    (Kp, Cp), lambda i: (0, 0), pipeline_mode=pl.Buffered(1)
                ),
            ],
            out_specs=pl.BlockSpec((tm_eff, Cp), lambda i: (i, 0)),
        ),
        compiler_params=pltpu.CompilerParams(
            dimension_semantics=("parallel",),   # megacore-shardable on v7x
            vmem_limit_bytes=vmem_limit,
        ),
        cost_estimate=pl.CostEstimate(
            flops=2 * Mp * Kp * Cp,              # single fused matmul
            transcendentals=0,
            bytes_accessed=(
                itemsize * (Mp * Kp + Kp * Cp)
                + jnp.dtype(out_dtype).itemsize * Mp * Cp
            ),
        ),
    )(patches, w_fused)

    # (Mp, Cp) -> (M, Cout) -> (N, Ho, Wo, Cout) -> NCHW to match PyTorch.
    out = out_flat[:M, :Cout].reshape(N, Ho, Wo, Cout)
    return jnp.transpose(out, (0, 3, 1, 2))


if __name__ == "__main__":
    # Small deterministic shapes: batch=2, Cin=4, Cout=8, 16x16 input, 3x3 conv.
    N, Cin, Cout, H, W, KH = 2, 4, 8, 16, 16, 3
    key = jax.random.PRNGKey(0)
    kx, k1, k2 = jax.random.split(key, 3)

    x = jax.random.normal(kx, (N, Cin, H, W), dtype=jnp.float32)
    bound = 1.0 / (Cin * KH * KH) ** 0.5  # Conv2d default init scale
    w1 = jax.random.uniform(k1, (Cout, Cin, KH, KH), jnp.float32, -bound, bound)
    w2 = jax.random.uniform(k2, (Cout, Cin, KH, KH), jnp.float32, -bound, bound)

    out = ipex_conv_add(x, w1, w2)
    out = jax.block_until_ready(out)

    dn = ("NCHW", "OIHW", "NCHW")
    ref = lax.conv_general_dilated(x, w1, (1, 1), "VALID", dimension_numbers=dn) + \
          lax.conv_general_dilated(x, w2, (1, 1), "VALID", dimension_numbers=dn)

    assert out.shape == ref.shape == (N, Cout, H - KH + 1, W - KH + 1)
    assert out.dtype == ref.dtype
    assert jnp.allclose(out, ref, rtol=1e-4, atol=1e-5), (
        "mismatch vs reference, max abs err = "
        f"{float(jnp.max(jnp.abs(out - ref)))}"
    )

    print("KERNEL_OK")
</pallas_src>

<mosaic_0001>
module attributes {stable_mosaic.version = 11 : i64} {
  func.func @conv_add_kernel(%arg0: i32, %arg1: memref<200x128xf32, #tpu.memory_space<vmem>>, %arg2: memref<128x128xf32, #tpu.memory_space<vmem>>, %arg3: memref<200x128xf32, #tpu.memory_space<vmem>>) attributes {dimension_semantics = [#tpu.dimension_semantics<parallel>], iteration_bounds = array<i64: 2>, scalar_prefetch = 0 : i64, scratch_operands = 0 : i64, tpu.core_type = #tpu.core_type<tc>, window_params = [{transform_indices = @transform_0, window_bounds = array<i64: 200, 128>}, {pipeline_mode = #tpu.pipeline_mode<synchronous>, transform_indices = @transform_1, window_bounds = array<i64: 128, 128>}, {transform_indices = @transform_2, window_bounds = array<i64: 200, 128>}]} {
    %c0 = arith.constant 0 : index
    %c0_0 = arith.constant 0 : index
    %0 = vector.load %arg1[%c0, %c0_0] : memref<200x128xf32, #tpu.memory_space<vmem>>, vector<200x128xf32>
    %c0_1 = arith.constant 0 : index
    %c0_2 = arith.constant 0 : index
    %1 = vector.load %arg2[%c0_1, %c0_2] : memref<128x128xf32, #tpu.memory_space<vmem>>, vector<128x128xf32>
    %cst = arith.constant dense<0.000000e+00> : vector<200x128xf32>
    %2 = tpu.matmul %0, %1, %cst {dimension_numbers = #tpu.dot_dimension_numbers<[1], [0], [0], [1], [0, 0, 1, 1], [], []>} : vector<200x128xf32>, vector<128x128xf32>, vector<200x128xf32> -> vector<200x128xf32>
    %c0_3 = arith.constant 0 : index
    %c0_4 = arith.constant 0 : index
    %3 = vector.load %arg3[%c0_3, %c0_4] : memref<200x128xf32, #tpu.memory_space<vmem>>, vector<200x128xf32>
    tpu.vector_store %arg3[%c0_3, %c0_4], %2 {strides = array<i32>} : memref<200x128xf32, #tpu.memory_space<vmem>>, vector<200x128xf32>,
    return
  }
  func.func @transform_0(%arg0: i32) -> (i32, i32) {
    %c0_i32 = arith.constant 0 : i32
    %c0_i32_0 = arith.constant 0 : i32
    return %arg0, %c0_i32 : i32, i32
  }
  func.func @transform_1(%arg0: i32) -> (i32, i32) {
    %c0_i32 = arith.constant 0 : i32
    %c0_i32_0 = arith.constant 0 : i32
    %c0_i32_1 = arith.constant 0 : i32
    return %c0_i32, %c0_i32_0 : i32, i32
  }
  func.func @transform_2(%arg0: i32) -> (i32, i32) {
    %c0_i32 = arith.constant 0 : i32
    %c0_i32_0 = arith.constant 0 : i32
    return %arg0, %c0_i32 : i32, i32
  }
}

</mosaic_0001>

<llo_original>
// kernel: tpu_custom_call.1
$region0: #{tpu_custom_call.1}
  #allocation0 [shape = 'u32[]', space=smem, size = 0x4, offset = 0x4, fixed_abs, tag = 'smem constant byte address 0x4 - core index']
  #allocation1 [shape = 'u32[144,128]{1,0:T(1,128)}', space=vmem, size = 0x12000, scoped, tag = 'internal scratch']
  %s0 = inlined_call_operand.hbm [shape: f32[400,128], index: 0, kind: input, shape index: {}]
  %s1 = inlined_call_operand.hbm [shape: f32[128,128], index: 1, kind: input, shape index: {}]
  %s2 = inlined_call_operand.hbm [shape: f32[400,128], index: 2, kind: output, shape index: {}]
  %s3 = sld [smem:[#allocation0]]
  $region49: #{tpu_custom_call.1} parent=0
    _
  %s5 = ssub.s32 1, %s3
  %s6 = scalar_select 0, %s5, %s3
  $region1: #{tpu_custom_call.1} parent=0
    #allocation2 [shape = 'u8[204800]{0}', space=vmem, size = 0x32000, scoped, tag = 'input window, operand 0']
    #allocation3 [shape = 's32[2]{0}', space=sflag, size = 0x8, scoped, tag = 'scoped memory for tpu_custom_call.1']
    #allocation4 [shape = 's32[2]{0}', space=sflag, size = 0x8, scoped, tag = 'scoped memory for tpu_custom_call.1']
    #allocation5 [shape = 'u8[65536]{0}', space=vmem, size = 0x10000, scoped, tag = 'input window, operand 1, single buffered']
    #allocation6 [shape = 's32[1]{0}', space=sflag, size = 0x4, scoped, tag = 'scoped memory for tpu_custom_call.1']
    #allocation7 [shape = 'u8[204800]{0}', space=vmem, size = 0x32000, scoped, tag = 'output window, operand 0']
    %7 = vsyncpa [#allocation3], 0
    %s8 = scalar_lea.sflag [#allocation3], 1
    %9 = vsyncpa %s8, 0
    %10 = vsyncpa [#allocation6], 0
    %11 = vsyncpa [#allocation4], 0
    %s12 = scalar_lea.sflag [#allocation4], 1
    %13 = vsyncpa %s12, 0
    loop: start=0, step=1, limit=4
    $region2: #{tpu_custom_call.1} parent=1 // loop_pre_header
      _
    $region3: #{tpu_custom_call.1} parent=1 // loop_header
      %s15 = sphi 0, %s19
      %p16 = scmp.ge.s32.totalorder %s15, 4
      %s25 = sphi 0, %s27
      %s28 = sphi 0, %s25
      %s29 = sphi 0, %s28
      %s45 = sphi 0, %s29
      %s49 = sphi 0, %s49
      %s51 = sphi 0, %s49
      %s52 = sphi 0, %s51
      %s66 = sphi 0, %s52
      %s72 = sphi 0, %s74
      %s75 = sphi 0, %s72
      %s76 = sphi 0, %s75
      %s92 = sphi 0, %s76
    $region4: #{tpu_custom_call.1} parent=1 // loop_header_branch
      %18 = sbr.rel (%p16) target = $region8
    $region5: #{tpu_custom_call.1} parent=1 // loop_body
      %s20 = ssub.s32 %s15, 1
      %s21 = ssub.s32 %s15, 2
      %s22 = sadd.s32 %s15, 1
      %s23 = ssub.s32 %s15, %s22
      %p24 = scmp.eq.s32.totalorder %s23, 0
      %s26 = sadd.s32 %s25, 1
      %s27 = scalar_select %p24, %s25, %s26
      %p30 = pneg %p24
      %p31 = scmp.eq.s32.totalorder %s15, 1
      %p32 = por %p30, %p31
      %p33 = scmp.ne.s32.totalorder %s25, %s28
      %p34 = scmp.eq.s32.totalorder %s15, 0
      %p35 = por %p33, %p34
      %p36 = scmp.ne.s32.totalorder %s25, %s28
      %p37 = scmp.eq.s32.totalorder %s20, 1
      %p38 = por %p36, %p37
      %p39 = scmp.ne.s32.totalorder %s28, %s29
      %p40 = scmp.eq.s32.totalorder %s20, 0
      %p41 = por %p39, %p40
      %p42 = scmp.ne.s32.totalorder %s28, %s29
      %p43 = scmp.eq.s32.totalorder %s21, 1
      %p44 = por %p42, %p43
      %p46 = scmp.ne.s32.totalorder %s29, %s45
      %p47 = scmp.eq.s32.totalorder %s21, 0
      %p48 = por %p46, %p47
      %s50 = sadd.s32 %s49, 1
      %p53 = scmp.eq.s32.totalorder %s15, 1
      %p54 = scmp.ne.s32.totalorder %s49, %s51
      %p55 = scmp.eq.s32.totalorder %s15, 0
      %p56 = por %p54, %p55
      %p57 = scmp.ne.s32.totalorder %s49, %s51
      %p58 = scmp.eq.s32.totalorder %s20, 1
      %p59 = por %p57, %p58
      %p60 = scmp.ne.s32.totalorder %s51, %s52
      %p61 = scmp.eq.s32.totalorder %s20, 0
      %p62 = por %p60, %p61
      %p63 = scmp.ne.s32.totalorder %s51, %s52
      %p64 = scmp.eq.s32.totalorder %s21, 1
      %p65 = por %p63, %p64
      %p67 = scmp.ne.s32.totalorder %s52, %s66
      %p68 = scmp.eq.s32.totalorder %s21, 0
      %p69 = por %p67, %p68
      %s70 = ssub.s32 %s15, %s22
      %p71 = scmp.eq.s32.totalorder %s70, 0
      %s73 = sadd.s32 %s72, 1
      %s74 = scalar_select %p71, %s72, %s73
      %p77 = pneg %p71
      %p78 = scmp.eq.s32.totalorder %s15, 1
      %p79 = por %p77, %p78
      %p80 = scmp.ne.s32.totalorder %s72, %s75
      %p81 = scmp.eq.s32.totalorder %s15, 0
      %p82 = por %p80, %p81
      %p83 = scmp.ne.s32.totalorder %s72, %s75
      %p84 = scmp.eq.s32.totalorder %s20, 1
      %p85 = por %p83, %p84
      %p86 = scmp.ne.s32.totalorder %s75, %s76
      %p87 = scmp.eq.s32.totalorder %s20, 0
      %p88 = por %p86, %p87
      %p89 = scmp.ne.s32.totalorder %s75, %s76
      %p90 = scmp.eq.s32.totalorder %s21, 1
      %p91 = por %p89, %p90
      %p93 = scmp.ne.s32.totalorder %s76, %s92
      %p94 = scmp.eq.s32.totalorder %s21, 0
      %p95 = por %p93, %p94
      %p96 = scmp.le.s32.totalorder 1, %s15
      %p97 = scmp.lt.s32.totalorder %s15, 3
      %p98 = pnand %p96, %p97
      %p99 = pneg %p98
      // Predicated region
      $region9: #{tpu_custom_call.1} parent=5 // pred_check
        _
      $region10: #{tpu_custom_call.1} parent=5 // pred_check_branch
        %101 = sbr.rel (%p98) target = $region12
      $region11: #{tpu_custom_call.1} parent=5 // pred_region
        %s102 = ssub.s32 %s15, 1
        // Predicated region
        $region13: #{tpu_custom_call.1} parent=11 // pred_check
          %p103 = pneg %p62
        $region14: #{tpu_custom_call.1} parent=11 // pred_check_branch
          %105 = sbr.rel (%p103) target = $region16
        $region15: #{tpu_custom_call.1} parent=11 // pred_region
          %s107 = ssub.s32 2048, 2048
          %108 = vsyncadd [#allocation6], %s107
          %s109 = sshll.u32 [#allocation5], 4
          %s110 = int_to_ptr.vmem [resolvable:$true] %s109
          %115 = dma.hbm_to_vmem [thread:$0]  %s1, 2048, %s110, [#allocation6], 128, 128, 8
        $region16: #{tpu_custom_call.1} parent=11 // pred_fallthru
          _
      $region12: #{tpu_custom_call.1} parent=5 // pred_fallthru
        _
      %p116 = scmp.lt.s32.totalorder %s15, 2
      // Predicated region
      $region17: #{tpu_custom_call.1} parent=5 // pred_check
        %p117 = pneg %p116
      $region18: #{tpu_custom_call.1} parent=5 // pred_check_branch
        %119 = sbr.rel (%p117) target = $region20
      $region19: #{tpu_custom_call.1} parent=5 // pred_region
        // Predicated region
        $region21: #{tpu_custom_call.1} parent=19 // pred_check
          %p120 = pneg %p35
        $region22: #{tpu_custom_call.1} parent=19 // pred_check_branch
          %122 = sbr.rel (%p120) target = $region24
        $region23: #{tpu_custom_call.1} parent=19 // pred_region
          %s123 = sand.u32 %s25, 1
          %s124 = scalar_lea.sflag [#allocation3], %s123
          %s125 = sand.u32 %s25, 1
          %s126 = smul.addr %s125, 200
          %s127 = scalar_lea.vmem [#allocation2], %s126
          %s128 = smul.u32 25, %s15
          %s130 = ssub.s32 3200, 3200
          %131 = vsyncadd %s124, %s130
          %s132 = smul.addr %s128, 128
          %s133 = scalar_lea.hbm %s0, %s132
          %s134 = sshll.u32 %s127, 4
          %s135 = int_to_ptr.vmem [resolvable:$true] %s134
          %140 = dma.hbm_to_vmem [thread:$0]  %s133, 3200, %s135, %s124, 128, 128, 8
        $region24: #{tpu_custom_call.1} parent=19 // pred_fallthru
          _
      $region20: #{tpu_custom_call.1} parent=5 // pred_fallthru
        _
      %p141 = scmp.le.s32.totalorder 1, %s15
      %p142 = scmp.lt.s32.totalorder %s15, 3
      %p143 = pnand %p141, %p142
      %p144 = pneg %p143
      // Predicated region
      $region25: #{tpu_custom_call.1} parent=5 // pred_check
        _
      $region26: #{tpu_custom_call.1} parent=5 // pred_check_branch
        %146 = sbr.rel (%p143) target = $region28
      $region27: #{tpu_custom_call.1} parent=5 // pred_region
        %s147 = ssub.s32 %s15, 1
        %s148 = sand.u32 %s28, 1
        %s149 = scalar_lea.sflag [#allocation3], %s148
        %s150 = sand.u32 %s28, 1
        %s151 = smul.addr %s150, 200
        %s152 = scalar_lea.vmem [#allocation2], %s151
        // Predicated region
        $region29: #{tpu_custom_call.1} parent=27 // pred_check
          %p153 = pneg %p41
        $region30: #{tpu_custom_call.1} parent=27 // pred_check_branch
          %155 = sbr.rel (%p153) target = $region32
        $region31: #{tpu_custom_call.1} parent=27 // pred_region
          %156 = dma.done %s149, 3200
        $region32: #{tpu_custom_call.1} parent=27 // pred_fallthru
          _
        // Predicated region
        $region33: #{tpu_custom_call.1} parent=27 // pred_check
          %p157 = pneg %p62
        $region34: #{tpu_custom_call.1} parent=27 // pred_check_branch
          %159 = sbr.rel (%p157) target = $region36
        $region35: #{tpu_custom_call.1} parent=27 // pred_region
          %160 = dma.done [#allocation6], 2048
        $region36: #{tpu_custom_call.1} parent=27 // pred_fallthru
          _
        %s161 = sand.u32 %s28, 1
        %s162 = scalar_lea.sflag [#allocation3], %s161
        %s163 = sand.u32 %s28, 1
        %s164 = smul.addr %s163, 200
        %s165 = scalar_lea.vmem [#allocation2], %s164
        %p166 = pneg %p41
        %p167 = pneg %p38
        %p168 = pneg %p62
        %p169 = pneg %p59
        %p170 = pneg %p88
        %p171 = pneg %p85
        %s172 = sand.u32 %s75, 1
        %s173 = scalar_lea.sflag [#allocation4], %s172
        %s174 = sand.u32 %s75, 1
        %s175 = smul.addr %s174, 200
        %s176 = scalar_lea.vmem [#allocation7], %s175
        %s177 = smul.u32 25, %s20
        %s178 = smul.u32 25, %s20
        %v179 = vld [vmem:[%s152] sm:$0xff]
        %v180 = vld [vmem:[%s152 + $0x8] sm:$0xff]
        %v181 = vld [vmem:[%s152 + $0x10] sm:$0xff]
        %v182 = vld [vmem:[%s152 + $0x18] sm:$0xff]
        %v183 = vld [vmem:[%s152 + $0x20] sm:$0xff]
        %v184 = vld [vmem:[%s152 + $0x28] sm:$0xff]
        %v185 = vld [vmem:[%s152 + $0x30] sm:$0xff]
        %v186 = vld [vmem:[%s152 + $0x38] sm:$0xff]
        %v187 = vld [vmem:[%s152 + $0x40] sm:$0xff]
        %v188 = vld [vmem:[%s152 + $0x48] sm:$0xff]
        %v189 = vld [vmem:[%s152 + $0x50] sm:$0xff]
        %v190 = vld [vmem:[%s152 + $0x58] sm:$0xff]
        %v191 = vld [vmem:[%s152 + $0x60] sm:$0xff]
        %v192 = vld [vmem:[%s152 + $0x68] sm:$0xff]
        %v193 = vld [vmem:[%s152 + $0x70] sm:$0xff]
        %v194 = vld [vmem:[%s152 + $0x78] sm:$0xff]
        %v195 = vld [vmem:[%s152 + $0x80] sm:$0xff]
        %v196 = vld [vmem:[%s152 + $0x88] sm:$0xff]
        %v197 = vld [vmem:[%s152 + $0x90] sm:$0xff]
        %v198 = vld [vmem:[%s152 + $0x98] sm:$0xff]
        %v199 = vld [vmem:[%s152 + $0xa0] sm:$0xff]
        %v200 = vld [vmem:[%s152 + $0xa8] sm:$0xff]
        %v201 = vld [vmem:[%s152 + $0xb0] sm:$0xff]
        %v202 = vld [vmem:[%s152 + $0xb8] sm:$0xff]
        %v203 = vld [vmem:[%s152 + $0xc0] sm:$0xff]
        %v204 = vld [vmem:[#allocation5] sm:$0xff]
        %v205 = vld [vmem:[#allocation5 + $0x8] sm:$0xff]
        %v206 = vld [vmem:[#allocation5 + $0x10] sm:$0xff]
        %v207 = vld [vmem:[#allocation5 + $0x18] sm:$0xff]
        %v208 = vld [vmem:[#allocation5 + $0x20] sm:$0xff]
        %v209 = vld [vmem:[#allocation5 + $0x28] sm:$0xff]
        %v210 = vld [vmem:[#allocation5 + $0x30] sm:$0xff]
        %v211 = vld [vmem:[#allocation5 + $0x38] sm:$0xff]
        %v212 = vld [vmem:[#allocation5 + $0x40] sm:$0xff]
        %v213 = vld [vmem:[#allocation5 + $0x48] sm:$0xff]
        %v214 = vld [vmem:[#allocation5 + $0x50] sm:$0xff]
        %v215 = vld [vmem:[#allocation5 + $0x58] sm:$0xff]
        %v216 = vld [vmem:[#allocation5 + $0x60] sm:$0xff]
        %v217 = vld [vmem:[#allocation5 + $0x68] sm:$0xff]
        %v218 = vld [vmem:[#allocation5 + $0x70] sm:$0xff]
        %v219 = vld [vmem:[#allocation5 + $0x78] sm:$0xff]
        %220 = vmatprep.subr.mxu0 0.0
        %221 = vmatpush1.msra.mxu0 %v204
        %222 = vmatprep.subr.mxu0 0.0
        %223 = vmatpush1.msra.mxu0 %v205
        %224 = vmatprep.subr.mxu0 0.0
        %225 = vmatpush1.msra.mxu0 %v206
        %226 = vmatprep.subr.mxu0 0.0
        %227 = vmatpush1.msra.mxu0 %v207
        %228 = vmatprep.subr.mxu0 0.0
        %229 = vmatpush1.msra.mxu0 %v208
        %230 = vmatprep.subr.mxu0 0.0
        %231 = vmatpush1.msra.mxu0 %v209
        %232 = vmatprep.subr.mxu0 0.0
        %233 = vmatpush1.msra.mxu0 %v210
        %234 = vmatprep.subr.mxu0 0.0
        %235 = vmatpush1.msra.mxu0 %v211
        %236 = vmatprep.subr.mxu0 0.0
        %237 = vmatpush1.msra.mxu0 %v212
        %238 = vmatprep.subr.mxu0 0.0
        %239 = vmatpush1.msra.mxu0 %v213
        %240 = vmatprep.subr.mxu0 0.0
        %241 = vmatpush1.msra.mxu0 %v214
        %242 = vmatprep.subr.mxu0 0.0
        %243 = vmatpush1.msra.mxu0 %v215
        %244 = vmatprep.subr.mxu0 0.0
        %245 = vmatpush1.msra.mxu0 %v216
        %246 = vmatprep.subr.mxu0 0.0
        %247 = vmatpush1.msra.mxu0 %v217
        %248 = vmatprep.subr.mxu0 0.0
        %249 = vmatpush1.msra.mxu0 %v218
        %250 = vmatprep.subr.mxu0 0.0
        %251 = vmatpush1.msra.mxu0 %v219
        %252 = vmatprep.subr.mxu0 0.0
        %253 = vmatpush1.msra.mxu0 0.0
        %254 = vmatprep.subr.mxu0 0.0
        %255 = vmatpush1.msra.mxu0 0.0
        %256 = vmatprep.subr.mxu0 0.0
        %257 = vmatpush1.msra.mxu0 0.0
        %258 = vmatprep.subr.mxu0 0.0
        %259 = vmatpush1.msra.mxu0 0.0
        %260 = vmatprep.subr.mxu0 0.0
        %261 = vmatpush1.msra.mxu0 0.0
        %262 = vmatprep.subr.mxu0 0.0
        %263 = vmatpush1.msra.mxu0 0.0
        %264 = vmatprep.subr.mxu0 0.0
        %265 = vmatpush1.msra.mxu0 0.0
        %266 = vmatprep.subr.mxu0 0.0
        %267 = vmatpush1.msra.mxu0 0.0
        %268 = vmatprep.subr.mxu0 0.0
        %269 = vmatpush1.msra.mxu0 0.0
        %270 = vmatprep.subr.mxu0 0.0
        %271 = vmatpush1.msra.mxu0 0.0
        %272 = vmatprep.subr.mxu0 0.0
        %273 = vmatpush1.msra.mxu0 0.0
        %274 = vmatprep.subr.mxu0 0.0
        %275 = vmatpush1.msra.mxu0 0.0
        %276 = vmatprep.subr.mxu0 0.0
        %277 = vmatpush1.msra.mxu0 0.0
        %278 = vmatprep.subr.mxu0 0.0
        %279 = vmatpush1.msra.mxu0 0.0
        %280 = vmatprep.subr.mxu0 0.0
        %281 = vmatpush1.msra.mxu0 0.0
        %282 = vmatprep.subr.mxu0 0.0
        %283 = vmatpush1.msra.mxu0 0.0
        %284 = vmatprep.mubr.f32.mxu0 0.0
        %285 = vmatmul.mubr.f32.gmra.mrb[0].mxu0 %v179
        %v286 = vpop.f32.mrb[0].mxu0
        %v287 = vadd.f32 0.0, %v286
        %v288 = vpop.f32.mrb[0].mxu0
        %289 = vmatprep.mubr.f32.mxu0 0.0
        %290 = vmatmul.mubr.f32.gmra.mrb[0].mxu0 %v180
        %v291 = vpop.f32.mrb[0].mxu0
        %v292 = vadd.f32 0.0, %v291
        %v293 = vpop.f32.mrb[0].mxu0
        %294 = vmatprep.mubr.f32.mxu0 0.0
        %295 = vmatmul.mubr.f32.gmra.mrb[0].mxu0 %v181
        %v296 = vpop.f32.mrb[0].mxu0
        %v297 = vadd.f32 0.0, %v296
        %v298 = vpop.f32.mrb[0].mxu0
        %299 = vmatprep.mubr.f32.mxu0 0.0
        %300 = vmatmul.mubr.f32.gmra.mrb[0].mxu0 %v182
        %v301 = vpop.f32.mrb[0].mxu0
        %v302 = vadd.f32 0.0, %v301
        %v303 = vpop.f32.mrb[0].mxu0
        %304 = vmatprep.mubr.f32.mxu0 0.0
        %305 = vmatmul.mubr.f32.gmra.mrb[0].mxu0 %v183
        %v306 = vpop.f32.mrb[0].mxu0
        %v307 = vadd.f32 0.0, %v306
        %v308 = vpop.f32.mrb[0].mxu0
        %309 = vmatprep.mubr.f32.mxu0 0.0
        %310 = vmatmul.mubr.f32.gmra.mrb[0].mxu0 %v184
        %v311 = vpop.f32.mrb[0].mxu0
        %v312 = vadd.f32 0.0, %v311
        %v313 = vpop.f32.mrb[0].mxu0
        %314 = vmatprep.mubr.f32.mxu0 0.0
        %315 = vmatmul.mubr.f32.gmra.mrb[0].mxu0 %v185
        %v316 = vpop.f32.mrb[0].mxu0
        %v317 = vadd.f32 0.0, %v316
        %v318 = vpop.f32.mrb[0].mxu0
        %319 = vmatprep.mubr.f32.mxu0 0.0
        %320 = vmatmul.mubr.f32.gmra.mrb[0].mxu0 %v186
        %v321 = vpop.f32.mrb[0].mxu0
        %v322 = vadd.f32 0.0, %v321
        %v323 = vpop.f32.mrb[0].mxu0
        %324 = vmatprep.mubr.f32.mxu0 0.0
        %325 = vmatmul.mubr.f32.gmra.mrb[0].mxu0 %v187
        %v326 = vpop.f32.mrb[0].mxu0
        %v327 = vadd.f32 0.0, %v326
        %v328 = vpop.f32.mrb[0].mxu0
        %329 = vmatprep.mubr.f32.mxu0 0.0
        %330 = vmatmul.mubr.f32.gmra.mrb[0].mxu0 %v188
        %v331 = vpop.f32.mrb[0].mxu0
        %v332 = vadd.f32 0.0, %v331
        %v333 = vpop.f32.mrb[0].mxu0
        %334 = vmatprep.mubr.f32.mxu0 0.0
        %335 = vmatmul.mubr.f32.gmra.mrb[0].mxu0 %v189
        %v336 = vpop.f32.mrb[0].mxu0
        %v337 = vadd.f32 0.0, %v336
        %v338 = vpop.f32.mrb[0].mxu0
        %339 = vmatprep.mubr.f32.mxu0 0.0
        %340 = vmatmul.mubr.f32.gmra.mrb[0].mxu0 %v190
        %v341 = vpop.f32.mrb[0].mxu0
        %v342 = vadd.f32 0.0, %v341
        %v343 = vpop.f32.mrb[0].mxu0
        %344 = vmatprep.mubr.f32.mxu0 0.0
        %345 = vmatmul.mubr.f32.gmra.mrb[0].mxu0 %v191
        %v346 = vpop.f32.mrb[0].mxu0
        %v347 = vadd.f32 0.0, %v346
        %v348 = vpop.f32.mrb[0].mxu0
        %349 = vmatprep.mubr.f32.mxu0 0.0
        %350 = vmatmul.mubr.f32.gmra.mrb[0].mxu0 %v192
        %v351 = vpop.f32.mrb[0].mxu0
        %v352 = vadd.f32 0.0, %v351
        %v353 = vpop.f32.mrb[0].mxu0
        %354 = vmatprep.mubr.f32.mxu0 0.0
        %355 = vmatmul.mubr.f32.gmra.mrb[0].mxu0 %v193
        %v356 = vpop.f32.mrb[0].mxu0
        %v357 = vadd.f32 0.0, %v356
        %v358 = vpop.f32.mrb[0].mxu0
        %359 = vmatprep.mubr.f32.mxu0 0.0
        %360 = vmatmul.mubr.f32.gmra.mrb[0].mxu0 %v194
        %v361 = vpop.f32.mrb[0].mxu0
        %v362 = vadd.f32 0.0, %v361
        %v363 = vpop.f32.mrb[0].mxu0
        %364 = vmatprep.mubr.f32.mxu0 0.0
        %365 = vmatmul.mubr.f32.gmra.mrb[0].mxu0 %v195
        %v366 = vpop.f32.mrb[0].mxu0
        %v367 = vadd.f32 0.0, %v366
        %v368 = vpop.f32.mrb[0].mxu0
        %369 = vmatprep.mubr.f32.mxu0 0.0
        %370 = vmatmul.mubr.f32.gmra.mrb[0].mxu0 %v196
        %v371 = vpop.f32.mrb[0].mxu0
        %v372 = vadd.f32 0.0, %v371
        %v373 = vpop.f32.mrb[0].mxu0
        %374 = vmatprep.mubr.f32.mxu0 0.0
        %375 = vmatmul.mubr.f32.gmra.mrb[0].mxu0 %v197
        %v376 = vpop.f32.mrb[0].mxu0
        %v377 = vadd.f32 0.0, %v376
        %v378 = vpop.f32.mrb[0].mxu0
        %379 = vmatprep.mubr.f32.mxu0 0.0
        %380 = vmatmul.mubr.f32.gmra.mrb[0].mxu0 %v198
        %v381 = vpop.f32.mrb[0].mxu0
        %v382 = vadd.f32 0.0, %v381
        %v383 = vpop.f32.mrb[0].mxu0
        %384 = vmatprep.mubr.f32.mxu0 0.0
        %385 = vmatmul.mubr.f32.gmra.mrb[0].mxu0 %v199
        %v386 = vpop.f32.mrb[0].mxu0
        %v387 = vadd.f32 0.0, %v386
        %v388 = vpop.f32.mrb[0].mxu0
        %389 = vmatprep.mubr.f32.mxu0 0.0
        %390 = vmatmul.mubr.f32.gmra.mrb[0].mxu0 %v200
        %v391 = vpop.f32.mrb[0].mxu0
        %v392 = vadd.f32 0.0, %v391
        %v393 = vpop.f32.mrb[0].mxu0
        %394 = vmatprep.mubr.f32.mxu0 0.0
        %395 = vmatmul.mubr.f32.gmra.mrb[0].mxu0 %v201
        %v396 = vpop.f32.mrb[0].mxu0
        %v397 = vadd.f32 0.0, %v396
        %v398 = vpop.f32.mrb[0].mxu0
        %399 = vmatprep.mubr.f32.mxu0 0.0
        %400 = vmatmul.mubr.f32.gmra.mrb[0].mxu0 %v202
        %v401 = vpop.f32.mrb[0].mxu0
        %v402 = vadd.f32 0.0, %v401
        %v403 = vpop.f32.mrb[0].mxu0
        %404 = vmatprep.mubr.f32.mxu0 0.0
        %405 = vmatmul.mubr.f32.gmra.mrb[0].mxu0 %v203
        %v406 = vpop.f32.mrb[0].mxu0
        %v407 = vadd.f32 0.0, %v406
        %v408 = vpop.f32.mrb[0].mxu0
        %409 = vdwg.mxu0
        %410 = vst [vmem:[%s176] sm:$0xff] %v287
        %411 = vst [vmem:[%s176 + $0x8] sm:$0xff] %v292
        %412 = vst [vmem:[%s176 + $0x10] sm:$0xff] %v297
        %413 = vst [vmem:[%s176 + $0x18] sm:$0xff] %v302
        %414 = vst [vmem:[%s176 + $0x20] sm:$0xff] %v307
        %415 = vst [vmem:[%s176 + $0x28] sm:$0xff] %v312
        %416 = vst [vmem:[%s176 + $0x30] sm:$0xff] %v317
        %417 = vst [vmem:[%s176 + $0x38] sm:$0xff] %v322
        %418 = vst [vmem:[%s176 + $0x40] sm:$0xff] %v327
        %419 = vst [vmem:[%s176 + $0x48] sm:$0xff] %v332
        %420 = vst [vmem:[%s176 + $0x50] sm:$0xff] %v337
        %421 = vst [vmem:[%s176 + $0x58] sm:$0xff] %v342
        %422 = vst [vmem:[%s176 + $0x60] sm:$0xff] %v347
        %423 = vst [vmem:[%s176 + $0x68] sm:$0xff] %v352
        %424 = vst [vmem:[%s176 + $0x70] sm:$0xff] %v357
        %425 = vst [vmem:[%s176 + $0x78] sm:$0xff] %v362
        %426 = vst [vmem:[%s176 + $0x80] sm:$0xff] %v367
        %427 = vst [vmem:[%s176 + $0x88] sm:$0xff] %v372
        %428 = vst [vmem:[%s176 + $0x90] sm:$0xff] %v377
        %429 = vst [vmem:[%s176 + $0x98] sm:$0xff] %v382
        %430 = vst [vmem:[%s176 + $0xa0] sm:$0xff] %v387
        %431 = vst [vmem:[%s176 + $0xa8] sm:$0xff] %v392
        %432 = vst [vmem:[%s176 + $0xb0] sm:$0xff] %v397
        %433 = vst [vmem:[%s176 + $0xb8] sm:$0xff] %v402
        %434 = vst [vmem:[%s176 + $0xc0] sm:$0xff] %v407
        %s435 = sand.u32 %s75, 1
        %s436 = scalar_lea.sflag [#allocation4], %s435
        %s437 = sand.u32 %s75, 1
        %s438 = smul.addr %s437, 200
        %s439 = scalar_lea.vmem [#allocation7], %s438
        // Predicated region
        $region37: #{tpu_custom_call.1} parent=27 // pred_check
          %p440 = pneg %p85
        $region38: #{tpu_custom_call.1} parent=27 // pred_check_branch
          %442 = sbr.rel (%p440) target = $region40
        $region39: #{tpu_custom_call.1} parent=27 // pred_region
          %s443 = smul.u32 25, %s20
          %s445 = ssub.s32 3200, 3200
          %446 = vsyncadd %s436, %s445
          %s447 = smul.addr %s443, 128
          %s448 = scalar_lea.hbm %s2, %s447
          %s449 = sshll.u32 %s439, 4
          %s450 = int_to_ptr.vmem [resolvable:$true] %s449
          %455 = dma.vmem_to_hbm [thread:$0]  %s450, 3200, %s448, %s436, 128, 128, 8
        $region40: #{tpu_custom_call.1} parent=27 // pred_fallthru
          _
      $region28: #{tpu_custom_call.1} parent=5 // pred_fallthru
        _
      %p456 = scmp.le.s32.totalorder 2, %s15
      // Predicated region
      $region41: #{tpu_custom_call.1} parent=5 // pred_check
        %p457 = pneg %p456
      $region42: #{tpu_custom_call.1} parent=5 // pred_check_branch
        %459 = sbr.rel (%p457) target = $region44
      $region43: #{tpu_custom_call.1} parent=5 // pred_region
        %s460 = ssub.s32 %s15, 2
        // Predicated region
        $region45: #{tpu_custom_call.1} parent=43 // pred_check
          %p461 = pneg %p91
        $region46: #{tpu_custom_call.1} parent=43 // pred_check_branch
          %463 = sbr.rel (%p461) target = $region48
        $region47: #{tpu_custom_call.1} parent=43 // pred_region
          %s464 = sand.u32 %s76, 1
          %s465 = scalar_lea.sflag [#allocation4], %s464
          %s466 = sand.u32 %s76, 1
          %s467 = smul.addr %s466, 200
          %s468 = scalar_lea.vmem [#allocation7], %s467
          %469 = dma.done %s465, 3200
        $region48: #{tpu_custom_call.1} parent=43 // pred_fallthru
          _
      $region44: #{tpu_custom_call.1} parent=5 // pred_fallthru
        _
    $region6: #{tpu_custom_call.1} parent=1 // loop_footer
      %s19 = sadd.s32 1, %s15
    $region7: #{tpu_custom_call.1} parent=1 // loop_footer_branch
      %14 = sbr.rel target = $region3
    $region8: #{tpu_custom_call.1} parent=1 // loop_exit
      _
    %470 = vsyncpa [#allocation3], 1
    %s471 = scalar_lea.sflag [#allocation3], 1
    %472 = vsyncpa %s471, 1
    %473 = vsyncpa [#allocation6], 1
    %474 = vsyncpa [#allocation4], 1
    %s475 = scalar_lea.sflag [#allocation4], 1
    %476 = vsyncpa %s475, 1

</llo_original>
